<compile_context>
chip_gen: v5e
topology: v5e:2x2
jax: 0.10.0
libtpu: 0.0.40
codegen_flags: <defaults>
</compile_context>

<pallas_src>
import jax
import jax.numpy as jnp
from jax.experimental import pallas as pl
from jax.experimental.pallas import tpu as pltpu

NEG_SLOPE = 0.01   # F.leaky_relu default negative slope
LANE = 128
O_PAD = 128        # lane-dense padding of the 1-wide output column


def _lrelu(x):
    return jnp.where(x >= 0, x, NEG_SLOPE * x)


def _round_up(x, m):
    return (x + m - 1) // m * m


def _pad2d(x, rows, cols, dtype=None):
    r, c = x.shape
    y = jnp.pad(x, ((0, rows - r), (0, cols - c)))
    return y.astype(dtype) if dtype is not None else y


# -----------------------------------------------------------------------------
# Fused DRPPlus kernel.
# Grid: (batch_tile b, gene_k_tile k). The gene contraction is accumulated into
# an f32 VMEM scratch; the rest of the head runs once, on the last k step.
# -----------------------------------------------------------------------------
def drp_plus_kernel(cell_ref, drug_ref,
                    w_expr_ref, b_expr_ref,
                    wm_expr_ref, wm_drug_ref, b_mid_ref,
                    w_out_ref, b_out_ref,
                    out_ref, acc_ref):
    f32 = jnp.float32
    k = pl.program_id(1)

    @pl.when(k == 0)
    def _():
        acc_ref[...] = jnp.zeros_like(acc_ref)

    # K-tiled gene-expression encoder matmul (bf16 operands, f32 accumulation).
    acc_ref[...] += jnp.dot(cell_ref[...], w_expr_ref[...],
                            preferred_element_type=f32)

    @pl.when(k == pl.num_programs(1) - 1)
    def _():
        expr_enc = _lrelu(acc_ref[...] + b_expr_ref[...])
        # cat([expr_enc, drug_enc], -1) @ W_mid == expr @ Wm[:E] + drug @ Wm[E:]
        x = (jnp.dot(expr_enc.astype(wm_expr_ref.dtype), wm_expr_ref[...],
                     preferred_element_type=f32)
             + jnp.dot(drug_ref[...], wm_drug_ref[...],
                       preferred_element_type=f32)
             + b_mid_ref[...])
        x = _lrelu(x)
        # Lane-dense (TB, 128) output block; the real prediction lives in column 0.
        out_ref[...] = (jnp.dot(x.astype(w_out_ref.dtype), w_out_ref[...],
                                preferred_element_type=f32)
                        + b_out_ref[...])


# -----------------------------------------------------------------------------
# Wrapper: padding, tiling, pallas_call.
# -----------------------------------------------------------------------------
def drp_plus_forward(params, cell_features, drug_enc, *,
                     block_b=128, block_k=512,
                     compute_dtype=jnp.bfloat16):
    f32 = jnp.float32
    B, G = cell_features.shape
    Bd, D = drug_enc.shape
    assert Bd == B
    E = params['w_expr'].shape[1]
    M = params['wm_expr'].shape[1]

    # Tile sizes (multiples of 128 on both matmul dims) and padded extents.
    TB = min(block_b, _round_up(B, LANE))
    B_pad = _round_up(B, TB)
    TK = min(block_k, _round_up(G, LANE))
    G_pad = _round_up(G, TK)
    E_pad = _round_up(E, LANE)
    D_pad = _round_up(D, LANE)
    M_pad = _round_up(M, LANE)

    # Zero-pad operands once; matmul inputs go to bf16, biases stay f32.
    cell_p = _pad2d(cell_features, B_pad, G_pad, compute_dtype)
    drug_p = _pad2d(drug_enc, B_pad, D_pad, compute_dtype)
    w_expr_p = _pad2d(params['w_expr'], G_pad, E_pad, compute_dtype)
    b_expr_p = _pad2d(params['b_expr'], 1, E_pad, f32)
    wm_expr_p = _pad2d(params['wm_expr'], E_pad, M_pad, compute_dtype)
    wm_drug_p = _pad2d(params['wm_drug'], D_pad, M_pad, compute_dtype)
    b_mid_p = _pad2d(params['b_mid'], 1, M_pad, f32)
    w_out_p = _pad2d(params['w_out'], M_pad, O_PAD, compute_dtype)
    b_out_p = _pad2d(params['b_out'], 1, O_PAD, f32)

    grid_spec = pltpu.PrefetchScalarGridSpec(
        num_scalar_prefetch=0,
        grid=(B_pad // TB, G_pad // TK),
        in_specs=[
            pl.BlockSpec((TB, TK), lambda b, k: (b, k)),        # cell_features
            pl.BlockSpec((TB, D_pad), lambda b, k: (b, 0)),     # drug_enc
            pl.BlockSpec((TK, E_pad), lambda b, k: (k, 0)),     # w_expr
            pl.BlockSpec((1, E_pad), lambda b, k: (0, 0)),      # b_expr
            pl.BlockSpec((E_pad, M_pad), lambda b, k: (0, 0)),  # wm_expr
            pl.BlockSpec((D_pad, M_pad), lambda b, k: (0, 0)),  # wm_drug
            pl.BlockSpec((1, M_pad), lambda b, k: (0, 0)),      # b_mid
            pl.BlockSpec((M_pad, O_PAD), lambda b, k: (0, 0)),  # w_out
            pl.BlockSpec((1, O_PAD), lambda b, k: (0, 0)),      # b_out
        ],
        out_specs=pl.BlockSpec((TB, O_PAD), lambda b, k: (b, 0)),
        scratch_shapes=[pltpu.VMEM((TB, E_pad), f32)],
    )

    out_padded = pl.pallas_call(
        drp_plus_kernel,
        out_shape=jax.ShapeDtypeStruct((B_pad, O_PAD), f32),
        grid_spec=grid_spec,
        compiler_params=pltpu.CompilerParams(
            dimension_semantics=("parallel", "arbitrary"),
            vmem_limit_bytes=32 * 1024 * 1024),
    )(cell_p, drug_p, w_expr_p, b_expr_p, wm_expr_p, wm_drug_p, b_mid_p,
      w_out_p, b_out_p)

    return out_padded[:B, :1]


# -----------------------------------------------------------------------------
# Pure-JAX reference with the same mixed-precision policy as the kernel
# (bf16-rounded matmul operands, f32 accumulation and biases).
# -----------------------------------------------------------------------------
def drp_plus_reference(params, cell_features, drug_enc,
                       compute_dtype=jnp.bfloat16):
    f32 = jnp.float32
    hi = jax.lax.Precision.HIGHEST

    def q(a):
        return a.astype(compute_dtype).astype(f32)

    expr_enc = _lrelu(jnp.dot(q(cell_features), q(params['w_expr']), precision=hi)
                      + params['b_expr'])
    x = (jnp.dot(q(expr_enc), q(params['wm_expr']), precision=hi)
         + jnp.dot(q(drug_enc), q(params['wm_drug']), precision=hi)
         + params['b_mid'])
    x = _lrelu(x)
    return jnp.dot(q(x), q(params['w_out']), precision=hi) + params['b_out']


if __name__ == "__main__":
    # Small, deliberately non-128-aligned shapes to exercise the padding path.
    n_genes, expr_enc_dim, conv2_dim, mid_dim = 300, 64, 96, 50
    batch = 37

    key = jax.random.PRNGKey(0)
    ks = jax.random.split(key, 10)
    f32 = jnp.float32

    def rnd(k, shape, scale=0.1):
        return (scale * jax.random.normal(k, shape)).astype(f32)

    # Weights stored as (in_features, out_features) == torch weight transposed.
    params = {
        'w_expr': rnd(ks[0], (n_genes, expr_enc_dim)),
        'b_expr': rnd(ks[1], (1, expr_enc_dim)),
        'wm_expr': rnd(ks[2], (expr_enc_dim, mid_dim)),   # mid weight, expr slice
        'wm_drug': rnd(ks[3], (conv2_dim, mid_dim)),      # mid weight, drug slice
        'b_mid': rnd(ks[4], (1, mid_dim)),
        'w_out': rnd(ks[5], (mid_dim, 1)),
        'b_out': rnd(ks[6], (1, 1)),
    }

    cell_features = rnd(ks[7], (batch, n_genes), 1.0)
    drug_enc = rnd(ks[8], (batch, conv2_dim), 1.0)

    out = drp_plus_forward(params, cell_features, drug_enc)
    out = jax.block_until_ready(out)

    ref = drp_plus_reference(params, cell_features, drug_enc)
    assert out.shape == (batch, 1), out.shape
    assert jnp.allclose(out, ref, rtol=1e-3, atol=1e-3), \
        f"mismatch vs reference: max abs err = {jnp.max(jnp.abs(out - ref))}"

    print("KERNEL_OK")
</pallas_src>

<mosaic_0001>
module attributes {stable_mosaic.version = 11 : i64} {
  func.func @drp_plus_kernel(%arg0: i32, %arg1: i32, %arg2: memref<128x384xbf16, #tpu.memory_space<vmem>>, %arg3: memref<128x128xbf16, #tpu.memory_space<vmem>>, %arg4: memref<384x128xbf16, #tpu.memory_space<vmem>>, %arg5: memref<1x128xf32, #tpu.memory_space<vmem>>, %arg6: memref<128x128xbf16, #tpu.memory_space<vmem>>, %arg7: memref<128x128xbf16, #tpu.memory_space<vmem>>, %arg8: memref<1x128xf32, #tpu.memory_space<vmem>>, %arg9: memref<128x128xbf16, #tpu.memory_space<vmem>>, %arg10: memref<1x128xf32, #tpu.memory_space<vmem>>, %arg11: memref<128x128xf32, #tpu.memory_space<vmem>>, %arg12: memref<128x128xf32, #tpu.memory_space<vmem>>) attributes {dimension_semantics = [#tpu.dimension_semantics<parallel>, #tpu.dimension_semantics<arbitrary>], iteration_bounds = array<i64: 1, 1>, scalar_prefetch = 0 : i64, scratch_operands = 1 : i64, tpu.core_type = #tpu.core_type<tc>, window_params = [{transform_indices = @transform_0, window_bounds = array<i64: 128, 384>}, {transform_indices = @transform_1, window_bounds = array<i64: 128, 128>}, {transform_indices = @transform_2, window_bounds = array<i64: 384, 128>}, {pipeline_mode = #tpu.pipeline_mode<synchronous>, transform_indices = @transform_3, window_bounds = array<i64: 1, 128>}, {pipeline_mode = #tpu.pipeline_mode<synchronous>, transform_indices = @transform_4, window_bounds = array<i64: 128, 128>}, {pipeline_mode = #tpu.pipeline_mode<synchronous>, transform_indices = @transform_5, window_bounds = array<i64: 128, 128>}, {pipeline_mode = #tpu.pipeline_mode<synchronous>, transform_indices = @transform_6, window_bounds = array<i64: 1, 128>}, {pipeline_mode = #tpu.pipeline_mode<synchronous>, transform_indices = @transform_7, window_bounds = array<i64: 128, 128>}, {pipeline_mode = #tpu.pipeline_mode<synchronous>, transform_indices = @transform_8, window_bounds = array<i64: 1, 128>}, {transform_indices = @transform_9, window_bounds = array<i64: 128, 128>}]} {
    %c0_i32 = arith.constant 0 : i32
    %0 = arith.cmpi eq, %arg1, %c0_i32 : i32
    %1 = arith.extui %0 : i1 to i32
    %c0_i32_0 = arith.constant 0 : i32
    %2 = arith.cmpi ne, %1, %c0_i32_0 : i32
    scf.if %2 {
      %cst_10 = arith.constant 0.000000e+00 : f32
      %12 = vector.broadcast %cst_10 : f32 to vector<128x128xf32>
      %c0_11 = arith.constant 0 : index
      %c0_12 = arith.constant 0 : index
      %13 = vector.load %arg12[%c0_11, %c0_12] : memref<128x128xf32, #tpu.memory_space<vmem>>, vector<128x128xf32>
      tpu.vector_store %arg12[%c0_11, %c0_12], %12 {strides = array<i32>} : memref<128x128xf32, #tpu.memory_space<vmem>>, vector<128x128xf32>,
    } else {
    }
    %c0 = arith.constant 0 : index
    %c0_1 = arith.constant 0 : index
    %3 = vector.load %arg12[%c0, %c0_1] : memref<128x128xf32, #tpu.memory_space<vmem>>, vector<128x128xf32>
    %c0_2 = arith.constant 0 : index
    %c0_3 = arith.constant 0 : index
    %4 = vector.load %arg2[%c0_2, %c0_3] : memref<128x384xbf16, #tpu.memory_space<vmem>>, vector<128x384xbf16>
    %c0_4 = arith.constant 0 : index
    %c0_5 = arith.constant 0 : index
    %5 = vector.load %arg4[%c0_4, %c0_5] : memref<384x128xbf16, #tpu.memory_space<vmem>>, vector<384x128xbf16>
    %cst = arith.constant dense<0.000000e+00> : vector<128x128xf32>
    %6 = tpu.matmul %4, %5, %cst {dimension_numbers = #tpu.dot_dimension_numbers<[1], [0], [0], [1], [0, 0, 1, 1], [], []>} : vector<128x384xbf16>, vector<384x128xbf16>, vector<128x128xf32> -> vector<128x128xf32>
    %7 = arith.addf %3, %6 : vector<128x128xf32>
    %c0_6 = arith.constant 0 : index
    %c0_7 = arith.constant 0 : index
    %8 = vector.load %arg12[%c0_6, %c0_7] : memref<128x128xf32, #tpu.memory_space<vmem>>, vector<128x128xf32>
    tpu.vector_store %arg12[%c0_6, %c0_7], %7 {strides = array<i32>} : memref<128x128xf32, #tpu.memory_space<vmem>>, vector<128x128xf32>,
    %c0_i32_8 = arith.constant 0 : i32
    %9 = arith.cmpi eq, %arg1, %c0_i32_8 : i32
    %10 = arith.extui %9 : i1 to i32
    %c0_i32_9 = arith.constant 0 : i32
    %11 = arith.cmpi ne, %10, %c0_i32_9 : i32
    scf.if %11 {
      %c0_10 = arith.constant 0 : index
      %c0_11 = arith.constant 0 : index
      %12 = vector.load %arg12[%c0_10, %c0_11] : memref<128x128xf32, #tpu.memory_space<vmem>>, vector<128x128xf32>
      %c0_12 = arith.constant 0 : index
      %c0_13 = arith.constant 0 : index
      %13 = vector.load %arg5[%c0_12, %c0_13] : memref<1x128xf32, #tpu.memory_space<vmem>>, vector<1x128xf32>
      %14 = vector.broadcast %13 : vector<1x128xf32> to vector<128x128xf32>
      %15 = arith.addf %12, %14 : vector<128x128xf32>
      %cst_14 = arith.constant 0.000000e+00 : f32
      %16 = vector.broadcast %cst_14 : f32 to vector<128x128xf32>
      %17 = arith.cmpf oge, %15, %16 : vector<128x128xf32>
      %cst_15 = arith.constant 0.00999999977 : f32
      %18 = vector.broadcast %cst_15 : f32 to vector<128x128xf32>
      %19 = arith.mulf %18, %15 : vector<128x128xf32>
      %20 = arith.select %17, %15, %19 : vector<128x128xi1>, vector<128x128xf32>
      %21 = arith.truncf %20 : vector<128x128xf32> to vector<128x128xbf16>
      %c0_16 = arith.constant 0 : index
      %c0_17 = arith.constant 0 : index
      %22 = vector.load %arg6[%c0_16, %c0_17] : memref<128x128xbf16, #tpu.memory_space<vmem>>, vector<128x128xbf16>
      %cst_18 = arith.constant dense<0.000000e+00> : vector<128x128xf32>
      %23 = tpu.matmul %21, %22, %cst_18 {dimension_numbers = #tpu.dot_dimension_numbers<[1], [0], [0], [1], [0, 0, 1, 1], [], []>} : vector<128x128xbf16>, vector<128x128xbf16>, vector<128x128xf32> -> vector<128x128xf32>
      %c0_19 = arith.constant 0 : index
      %c0_20 = arith.constant 0 : index
      %24 = vector.load %arg3[%c0_19, %c0_20] : memref<128x128xbf16, #tpu.memory_space<vmem>>, vector<128x128xbf16>
      %c0_21 = arith.constant 0 : index
      %c0_22 = arith.constant 0 : index
      %25 = vector.load %arg7[%c0_21, %c0_22] : memref<128x128xbf16, #tpu.memory_space<vmem>>, vector<128x128xbf16>
      %cst_23 = arith.constant dense<0.000000e+00> : vector<128x128xf32>
      %26 = tpu.matmul %24, %25, %cst_23 {dimension_numbers = #tpu.dot_dimension_numbers<[1], [0], [0], [1], [0, 0, 1, 1], [], []>} : vector<128x128xbf16>, vector<128x128xbf16>, vector<128x128xf32> -> vector<128x128xf32>
      %27 = arith.addf %23, %26 : vector<128x128xf32>
      %c0_24 = arith.constant 0 : index
      %c0_25 = arith.constant 0 : index
      %28 = vector.load %arg8[%c0_24, %c0_25] : memref<1x128xf32, #tpu.memory_space<vmem>>, vector<1x128xf32>
      %29 = vector.broadcast %28 : vector<1x128xf32> to vector<128x128xf32>
      %30 = arith.addf %27, %29 : vector<128x128xf32>
      %cst_26 = arith.constant 0.000000e+00 : f32
      %31 = vector.broadcast %cst_26 : f32 to vector<128x128xf32>
      %32 = arith.cmpf oge, %30, %31 : vector<128x128xf32>
      %cst_27 = arith.constant 0.00999999977 : f32
      %33 = vector.broadcast %cst_27 : f32 to vector<128x128xf32>
      %34 = arith.mulf %33, %30 : vector<128x128xf32>
      %35 = arith.select %32, %30, %34 : vector<128x128xi1>, vector<128x128xf32>
      %36 = arith.truncf %35 : vector<128x128xf32> to vector<128x128xbf16>
      %c0_28 = arith.constant 0 : index
      %c0_29 = arith.constant 0 : index
      %37 = vector.load %arg9[%c0_28, %c0_29] : memref<128x128xbf16, #tpu.memory_space<vmem>>, vector<128x128xbf16>
      %cst_30 = arith.constant dense<0.000000e+00> : vector<128x128xf32>
      %38 = tpu.matmul %36, %37, %cst_30 {dimension_numbers = #tpu.dot_dimension_numbers<[1], [0], [0], [1], [0, 0, 1, 1], [], []>} : vector<128x128xbf16>, vector<128x128xbf16>, vector<128x128xf32> -> vector<128x128xf32>
      %c0_31 = arith.constant 0 : index
      %c0_32 = arith.constant 0 : index
      %39 = vector.load %arg10[%c0_31, %c0_32] : memref<1x128xf32, #tpu.memory_space<vmem>>, vector<1x128xf32>
      %40 = vector.broadcast %39 : vector<1x128xf32> to vector<128x128xf32>
      %41 = arith.addf %38, %40 : vector<128x128xf32>
      %c0_33 = arith.constant 0 : index
      %c0_34 = arith.constant 0 : index
      %42 = vector.load %arg11[%c0_33, %c0_34] : memref<128x128xf32, #tpu.memory_space<vmem>>, vector<128x128xf32>
      tpu.vector_store %arg11[%c0_33, %c0_34], %41 {strides = array<i32>} : memref<128x128xf32, #tpu.memory_space<vmem>>, vector<128x128xf32>,
    } else {
    }
    return
  }
  func.func @transform_0(%arg0: i32, %arg1: i32) -> (i32, i32) {
    %c0_i32 = arith.constant 0 : i32
    return %arg0, %arg1 : i32, i32
  }
  func.func @transform_1(%arg0: i32, %arg1: i32) -> (i32, i32) {
    %c0_i32 = arith.constant 0 : i32
    %c0_i32_0 = arith.constant 0 : i32
    return %arg0, %c0_i32 : i32, i32
  }
  func.func @transform_2(%arg0: i32, %arg1: i32) -> (i32, i32) {
    %c0_i32 = arith.constant 0 : i32
    %c0_i32_0 = arith.constant 0 : i32
    return %arg1, %c0_i32 : i32, i32
  }
  func.func @transform_3(%arg0: i32, %arg1: i32) -> (i32, i32) {
    %c0_i32 = arith.constant 0 : i32
    %c0_i32_0 = arith.constant 0 : i32
    %c0_i32_1 = arith.constant 0 : i32
    return %c0_i32, %c0_i32_0 : i32, i32
  }
  func.func @transform_4(%arg0: i32, %arg1: i32) -> (i32, i32) {
    %c0_i32 = arith.constant 0 : i32
    %c0_i32_0 = arith.constant 0 : i32
    %c0_i32_1 = arith.constant 0 : i32
    return %c0_i32, %c0_i32_0 : i32, i32
  }
  func.func @transform_5(%arg0: i32, %arg1: i32) -> (i32, i32) {
    %c0_i32 = arith.constant 0 : i32
    %c0_i32_0 = arith.constant 0 : i32
    %c0_i32_1 = arith.constant 0 : i32
    return %c0_i32, %c0_i32_0 : i32, i32
  }
  func.func @transform_6(%arg0: i32, %arg1: i32) -> (i32, i32) {
    %c0_i32 = arith.constant 0 : i32
    %c0_i32_0 = arith.constant 0 : i32
    %c0_i32_1 = arith.constant 0 : i32
    return %c0_i32, %c0_i32_0 : i32, i32
  }
  func.func @transform_7(%arg0: i32, %arg1: i32) -> (i32, i32) {
    %c0_i32 = arith.constant 0 : i32
    %c0_i32_0 = arith.constant 0 : i32
    %c0_i32_1 = arith.constant 0 : i32
    return %c0_i32, %c0_i32_0 : i32, i32
  }
  func.func @transform_8(%arg0: i32, %arg1: i32) -> (i32, i32) {
    %c0_i32 = arith.constant 0 : i32
    %c0_i32_0 = arith.constant 0 : i32
    %c0_i32_1 = arith.constant 0 : i32
    return %c0_i32, %c0_i32_0 : i32, i32
  }
  func.func @transform_9(%arg0: i32, %arg1: i32) -> (i32, i32) {
    %c0_i32 = arith.constant 0 : i32
    %c0_i32_0 = arith.constant 0 : i32
    return %arg0, %c0_i32 : i32, i32
  }
}

</mosaic_0001>

<llo_original>
// kernel: tpu_custom_call.1
$region0: #{tpu_custom_call.1}
  #allocation0 [shape = 'u32[]', space=smem, size = 0x4, offset = 0x4, fixed_abs, tag = 'smem constant byte address 0x4 - core index']
  #allocation1 [shape = 'u32[72,128]{1,0:T(1,128)}', space=vmem, size = 0x9000, scoped, tag = 'internal scratch']
  #allocation2 [shape = 'f32[128,128]{1,0:T(8,128)}', space=vmem, size = 0x10000, scoped, tag = 'scratch operand']
  %s0 = inlined_call_operand.hbm [shape: bf16[128,384], index: 0, kind: input, shape index: {}]
  %s1 = inlined_call_operand.hbm [shape: bf16[128,128], index: 1, kind: input, shape index: {}]
  %s2 = inlined_call_operand.hbm [shape: bf16[384,128], index: 2, kind: input, shape index: {}]
  %s3 = inlined_call_operand.vmem [shape: f32[1,128], index: 3, kind: input, shape index: {}]
  %s4 = inlined_call_operand.hbm [shape: bf16[128,128], index: 4, kind: input, shape index: {}]
  %s5 = inlined_call_operand.hbm [shape: bf16[128,128], index: 5, kind: input, shape index: {}]
  %s6 = inlined_call_operand.vmem [shape: f32[1,128], index: 6, kind: input, shape index: {}]
  %s7 = inlined_call_operand.hbm [shape: bf16[128,128], index: 7, kind: input, shape index: {}]
  %s8 = inlined_call_operand.vmem [shape: f32[1,128], index: 8, kind: input, shape index: {}]
  %s9 = inlined_call_operand.hbm [shape: f32[128,128], index: 9, kind: output, shape index: {}]
  %s10 = sld [smem:[#allocation0]]
  $region78: #{tpu_custom_call.1} parent=0
    _
  %s12 = ssub.s32 1, %s10
  %s13 = scalar_select 0, %s12, %s10
  $region1: #{tpu_custom_call.1} parent=0
    #allocation3 [shape = 'u8[98304]{0}', space=vmem, size = 0x18000, scoped, tag = 'input window, operand 0, single buffered']
    #allocation4 [shape = 's32[1]{0}', space=sflag, size = 0x4, scoped, tag = 'scoped memory for tpu_custom_call.1']
    #allocation5 [shape = 's32[1]{0}', space=sflag, size = 0x4, scoped, tag = 'scoped memory for tpu_custom_call.1']
    #allocation6 [shape = 'u8[32768]{0}', space=vmem, size = 0x8000, scoped, tag = 'input window, operand 1, single buffered']
    #allocation7 [shape = 's32[1]{0}', space=sflag, size = 0x4, scoped, tag = 'scoped memory for tpu_custom_call.1']
    #allocation8 [shape = 'u8[98304]{0}', space=vmem, size = 0x18000, scoped, tag = 'input window, operand 2, single buffered']
    #allocation9 [shape = 'u8[32768]{0}', space=vmem, size = 0x8000, scoped, tag = 'input window, operand 4, single buffered']
    #allocation10 [shape = 's32[1]{0}', space=sflag, size = 0x4, scoped, tag = 'scoped memory for tpu_custom_call.1']
    #allocation11 [shape = 'u8[32768]{0}', space=vmem, size = 0x8000, scoped, tag = 'input window, operand 5, single buffered']
    #allocation12 [shape = 'u8[32768]{0}', space=vmem, size = 0x8000, scoped, tag = 'input window, operand 7, single buffered']
    #allocation13 [shape = 's32[1]{0}', space=sflag, size = 0x4, scoped, tag = 'scoped memory for tpu_custom_call.1']
    #allocation14 [shape = 'u8[65536]{0}', space=vmem, size = 0x10000, scoped, tag = 'output window, operand 0, single buffered']
    %14 = vsyncpa [#allocation4], 0
    %15 = vsyncpa [#allocation7], 0
    %16 = vsyncpa [#allocation10], 0
    %17 = vsyncpa [#allocation13], 0
    %18 = vsyncpa [#allocation5], 0
    // Predicated region
    $region2: #{tpu_custom_call.1} parent=1 // pred_check
      _
    $region3: #{tpu_custom_call.1} parent=1 // pred_check_branch
      %20 = sbr.rel (0) target = $region5
    $region4: #{tpu_custom_call.1} parent=1 // pred_region
      %22 = vsyncadd [#allocation4], 0
      %s23 = sshll.u32 %s0, 4
      %s24 = int_to_ptr.hbm [resolvable:$true] %s23
      %s25 = sshll.u32 [#allocation3], 4
      %s26 = int_to_ptr.vmem [resolvable:$true] %s25
      %31 = dma.hbm_to_vmem [thread:$0]  %s24, 3072, %s26, [#allocation4], 192, 192, 12
    $region5: #{tpu_custom_call.1} parent=1 // pred_fallthru
      _
    // Predicated region
    $region6: #{tpu_custom_call.1} parent=1 // pred_check
      _
    $region7: #{tpu_custom_call.1} parent=1 // pred_check_branch
      %33 = sbr.rel (0) target = $region9
    $region8: #{tpu_custom_call.1} parent=1 // pred_region
      %35 = vsyncadd [#allocation7], 0
      %s36 = sshll.u32 %s1, 4
      %s37 = int_to_ptr.hbm [resolvable:$true] %s36
      %s38 = sshll.u32 [#allocation6], 4
      %s39 = int_to_ptr.vmem [resolvable:$true] %s38
      %44 = dma.hbm_to_vmem [thread:$0]  %s37, 1024, %s39, [#allocation7], 64, 64, 4
    $region9: #{tpu_custom_call.1} parent=1 // pred_fallthru
      _
    // Predicated region
    $region10: #{tpu_custom_call.1} parent=1 // pred_check
      _
    $region11: #{tpu_custom_call.1} parent=1 // pred_check_branch
      %46 = sbr.rel (0) target = $region13
    $region12: #{tpu_custom_call.1} parent=1 // pred_region
      %48 = vsyncadd [#allocation7], 0
      %s49 = sshll.u32 %s2, 4
      %s50 = int_to_ptr.hbm [resolvable:$true] %s49
      %s51 = sshll.u32 [#allocation8], 4
      %s52 = int_to_ptr.vmem [resolvable:$true] %s51
      %57 = dma.hbm_to_vmem [thread:$0]  %s50, 3072, %s52, [#allocation7], 64, 64, 4
    $region13: #{tpu_custom_call.1} parent=1 // pred_fallthru
      _
    // Predicated region
    $region14: #{tpu_custom_call.1} parent=1 // pred_check
      _
    $region15: #{tpu_custom_call.1} parent=1 // pred_check_branch
      %59 = sbr.rel (0) target = $region17
    $region16: #{tpu_custom_call.1} parent=1 // pred_region
      _
    $region17: #{tpu_custom_call.1} parent=1 // pred_fallthru
      _
    // Predicated region
    $region18: #{tpu_custom_call.1} parent=1 // pred_check
      _
    $region19: #{tpu_custom_call.1} parent=1 // pred_check_branch
      %61 = sbr.rel (0) target = $region21
    $region20: #{tpu_custom_call.1} parent=1 // pred_region
      %63 = vsyncadd [#allocation10], 0
      %s64 = sshll.u32 %s4, 4
      %s65 = int_to_ptr.hbm [resolvable:$true] %s64
      %s66 = sshll.u32 [#allocation9], 4
      %s67 = int_to_ptr.vmem [resolvable:$true] %s66
      %72 = dma.hbm_to_vmem [thread:$0]  %s65, 1024, %s67, [#allocation10], 64, 64, 4
    $region21: #{tpu_custom_call.1} parent=1 // pred_fallthru
      _
    // Predicated region
    $region22: #{tpu_custom_call.1} parent=1 // pred_check
      _
    $region23: #{tpu_custom_call.1} parent=1 // pred_check_branch
      %74 = sbr.rel (0) target = $region25
    $region24: #{tpu_custom_call.1} parent=1 // pred_region
      %76 = vsyncadd [#allocation10], 0
      %s77 = sshll.u32 %s5, 4
      %s78 = int_to_ptr.hbm [resolvable:$true] %s77
      %s79 = sshll.u32 [#allocation11], 4
      %s80 = int_to_ptr.vmem [resolvable:$true] %s79
      %85 = dma.hbm_to_vmem [thread:$0]  %s78, 1024, %s80, [#allocation10], 64, 64, 4
    $region25: #{tpu_custom_call.1} parent=1 // pred_fallthru
      _
    // Predicated region
    $region26: #{tpu_custom_call.1} parent=1 // pred_check
      _
    $region27: #{tpu_custom_call.1} parent=1 // pred_check_branch
      %87 = sbr.rel (0) target = $region29
    $region28: #{tpu_custom_call.1} parent=1 // pred_region
      _
    $region29: #{tpu_custom_call.1} parent=1 // pred_fallthru
      _
    // Predicated region
    $region30: #{tpu_custom_call.1} parent=1 // pred_check
      _
    $region31: #{tpu_custom_call.1} parent=1 // pred_check_branch
      %89 = sbr.rel (0) target = $region33
    $region32: #{tpu_custom_call.1} parent=1 // pred_region
      %91 = vsyncadd [#allocation13], 0
      %s92 = sshll.u32 %s7, 4
      %s93 = int_to_ptr.hbm [resolvable:$true] %s92
      %s94 = sshll.u32 [#allocation12], 4
      %s95 = int_to_ptr.vmem [resolvable:$true] %s94
      %100 = dma.hbm_to_vmem [thread:$0]  %s93, 1024, %s95, [#allocation13], 64, 64, 4
    $region33: #{tpu_custom_call.1} parent=1 // pred_fallthru
      _
    // Predicated region
    $region34: #{tpu_custom_call.1} parent=1 // pred_check
      _
    $region35: #{tpu_custom_call.1} parent=1 // pred_check_branch
      %102 = sbr.rel (0) target = $region37
    $region36: #{tpu_custom_call.1} parent=1 // pred_region
      _
    $region37: #{tpu_custom_call.1} parent=1 // pred_fallthru
      _
    // Predicated region
    $region38: #{tpu_custom_call.1} parent=1 // pred_check
      _
    $region39: #{tpu_custom_call.1} parent=1 // pred_check_branch
      %104 = sbr.rel (0) target = $region41
    $region40: #{tpu_custom_call.1} parent=1 // pred_region
      %106 = dma.done [#allocation4], 3072
    $region41: #{tpu_custom_call.1} parent=1 // pred_fallthru
      _
    // Predicated region
    $region42: #{tpu_custom_call.1} parent=1 // pred_check
      _
    $region43: #{tpu_custom_call.1} parent=1 // pred_check_branch
      %108 = sbr.rel (0) target = $region45
    $region44: #{tpu_custom_call.1} parent=1 // pred_region
      %110 = dma.done [#allocation7], 1024
    $region45: #{tpu_custom_call.1} parent=1 // pred_fallthru
      _
    // Predicated region
    $region46: #{tpu_custom_call.1} parent=1 // pred_check
      _
    $region47: #{tpu_custom_call.1} parent=1 // pred_check_branch
      %112 = sbr.rel (0) target = $region49
    $region48: #{tpu_custom_call.1} parent=1 // pred_region
      %114 = dma.done [#allocation7], 3072
    $region49: #{tpu_custom_call.1} parent=1 // pred_fallthru
      _
    // Predicated region
    $region50: #{tpu_custom_call.1} parent=1 // pred_check
      _
    $region51: #{tpu_custom_call.1} parent=1 // pred_check_branch
      %116 = sbr.rel (0) target = $region53
    $region52: #{tpu_custom_call.1} parent=1 // pred_region
      %118 = dma.done [#allocation10], 1024
    $region53: #{tpu_custom_call.1} parent=1 // pred_fallthru
      _
    // Predicated region
    $region54: #{tpu_custom_call.1} parent=1 // pred_check
      _
    $region55: #{tpu_custom_call.1} parent=1 // pred_check_branch
      %120 = sbr.rel (0) target = $region57
    $region56: #{tpu_custom_call.1} parent=1 // pred_region
      %122 = dma.done [#allocation10], 1024
    $region57: #{tpu_custom_call.1} parent=1 // pred_fallthru
      _
    // Predicated region
    $region58: #{tpu_custom_call.1} parent=1 // pred_check
      _
    $region59: #{tpu_custom_call.1} parent=1 // pred_check_branch
      %124 = sbr.rel (0) target = $region61
    $region60: #{tpu_custom_call.1} parent=1 // pred_region
      %126 = dma.done [#allocation13], 1024
    $region61: #{tpu_custom_call.1} parent=1 // pred_fallthru
      _
    %p127 = scmp.eq.s32.totalorder 0, 0
    // Predicated region
    $region62: #{tpu_custom_call.1} parent=1 // pred_check
      %p128 = pneg %p127
    $region63: #{tpu_custom_call.1} parent=1 // pred_check_branch
      %130 = sbr.rel (%p128) target = $region65
    $region64: #{tpu_custom_call.1} parent=1 // pred_region
      %131 = vst [vmem:[#allocation2] sm:$0xff] 0.0
      %132 = vst [vmem:[#allocation2 + $0x8] sm:$0xff] 0.0
      %133 = vst [vmem:[#allocation2 + $0x10] sm:$0xff] 0.0
      %134 = vst [vmem:[#allocation2 + $0x18] sm:$0xff] 0.0
      %135 = vst [vmem:[#allocation2 + $0x20] sm:$0xff] 0.0
      %136 = vst [vmem:[#allocation2 + $0x28] sm:$0xff] 0.0
      %137 = vst [vmem:[#allocation2 + $0x30] sm:$0xff] 0.0
      %138 = vst [vmem:[#allocation2 + $0x38] sm:$0xff] 0.0
      %139 = vst [vmem:[#allocation2 + $0x40] sm:$0xff] 0.0
      %140 = vst [vmem:[#allocation2 + $0x48] sm:$0xff] 0.0
      %141 = vst [vmem:[#allocation2 + $0x50] sm:$0xff] 0.0
      %142 = vst [vmem:[#allocation2 + $0x58] sm:$0xff] 0.0
      %143 = vst [vmem:[#allocation2 + $0x60] sm:$0xff] 0.0
      %144 = vst [vmem:[#allocation2 + $0x68] sm:$0xff] 0.0
      %145 = vst [vmem:[#allocation2 + $0x70] sm:$0xff] 0.0
      %146 = vst [vmem:[#allocation2 + $0x78] sm:$0xff] 0.0
    $region65: #{tpu_custom_call.1} parent=1 // pred_fallthru
      _
    %v147 = vld [vmem:[#allocation2] sm:$0xff]
    %v148 = vld [vmem:[#allocation2 + $0x8] sm:$0xff]
    %v149 = vld [vmem:[#allocation2 + $0x10] sm:$0xff]
    %v150 = vld [vmem:[#allocation2 + $0x18] sm:$0xff]
    %v151 = vld [vmem:[#allocation2 + $0x20] sm:$0xff]
    %v152 = vld [vmem:[#allocation2 + $0x28] sm:$0xff]
    %v153 = vld [vmem:[#allocation2 + $0x30] sm:$0xff]
    %v154 = vld [vmem:[#allocation2 + $0x38] sm:$0xff]
    %v155 = vld [vmem:[#allocation2 + $0x40] sm:$0xff]
    %v156 = vld [vmem:[#allocation2 + $0x48] sm:$0xff]
    %v157 = vld [vmem:[#allocation2 + $0x50] sm:$0xff]
    %v158 = vld [vmem:[#allocation2 + $0x58] sm:$0xff]
    %v159 = vld [vmem:[#allocation2 + $0x60] sm:$0xff]
    %v160 = vld [vmem:[#allocation2 + $0x68] sm:$0xff]
    %v161 = vld [vmem:[#allocation2 + $0x70] sm:$0xff]
    %v162 = vld [vmem:[#allocation2 + $0x78] sm:$0xff]
    %v163 = vld [vmem:[#allocation3] sm:$0xff]
    %v164 = vld [vmem:[#allocation3 + $0x8] sm:$0xf]
    %v165 = vld [vmem:[#allocation3 + $0xc] sm:$0xff]
    %v166 = vld [vmem:[#allocation3 + $0x14] sm:$0xf]
    %v167 = vld [vmem:[#allocation3 + $0x18] sm:$0xff]
    %v168 = vld [vmem:[#allocation3 + $0x20] sm:$0xf]
    %v169 = vld [vmem:[#allocation3 + $0x24] sm:$0xff]
    %v170 = vld [vmem:[#allocation3 + $0x2c] sm:$0xf]
    %v171 = vld [vmem:[#allocation3 + $0x30] sm:$0xff]
    %v172 = vld [vmem:[#allocation3 + $0x38] sm:$0xf]
    %v173 = vld [vmem:[#allocation3 + $0x3c] sm:$0xff]
    %v174 = vld [vmem:[#allocation3 + $0x44] sm:$0xf]
    %v175 = vld [vmem:[#allocation3 + $0x48] sm:$0xff]
    %v176 = vld [vmem:[#allocation3 + $0x50] sm:$0xf]
    %v177 = vld [vmem:[#allocation3 + $0x54] sm:$0xff]
    %v178 = vld [vmem:[#allocation3 + $0x5c] sm:$0xf]
    %v179 = vld [vmem:[#allocation3 + $0x60] sm:$0xff]
    %v180 = vld [vmem:[#allocation3 + $0x68] sm:$0xf]
    %v181 = vld [vmem:[#allocation3 + $0x6c] sm:$0xff]
    %v182 = vld [vmem:[#allocation3 + $0x74] sm:$0xf]
    %v183 = vld [vmem:[#allocation3 + $0x78] sm:$0xff]
    %v184 = vld [vmem:[#allocation3 + $0x80] sm:$0xf]
    %v185 = vld [vmem:[#allocation3 + $0x84] sm:$0xff]
    %v186 = vld [vmem:[#allocation3 + $0x8c] sm:$0xf]
    %v187 = vld [vmem:[#allocation3 + $0x90] sm:$0xff]
    %v188 = vld [vmem:[#allocation3 + $0x98] sm:$0xf]
    %v189 = vld [vmem:[#allocation3 + $0x9c] sm:$0xff]
    %v190 = vld [vmem:[#allocation3 + $0xa4] sm:$0xf]
    %v191 = vld [vmem:[#allocation3 + $0xa8] sm:$0xff]
    %v192 = vld [vmem:[#allocation3 + $0xb0] sm:$0xf]
    %v193 = vld [vmem:[#allocation3 + $0xb4] sm:$0xff]
    %v194 = vld [vmem:[#allocation3 + $0xbc] sm:$0xf]
    %v195 = vld [vmem:[#allocation8] sm:$0xf]
    %v196 = vld [vmem:[#allocation8 + $0x4] sm:$0xf]
    %v197 = vld [vmem:[#allocation8 + $0x8] sm:$0xf]
    %v198 = vld [vmem:[#allocation8 + $0xc] sm:$0xf]
    %v199 = vld [vmem:[#allocation8 + $0x10] sm:$0xf]
    %v200 = vld [vmem:[#allocation8 + $0x14] sm:$0xf]
    %v201 = vld [vmem:[#allocation8 + $0x18] sm:$0xf]
    %v202 = vld [vmem:[#allocation8 + $0x1c] sm:$0xf]
    %v203 = vld [vmem:[#allocation8 + $0x20] sm:$0xf]
    %v204 = vld [vmem:[#allocation8 + $0x24] sm:$0xf]
    %v205 = vld [vmem:[#allocation8 + $0x28] sm:$0xf]
    %v206 = vld [vmem:[#allocation8 + $0x2c] sm:$0xf]
    %v207 = vld [vmem:[#allocation8 + $0x30] sm:$0xf]
    %v208 = vld [vmem:[#allocation8 + $0x34] sm:$0xf]
    %v209 = vld [vmem:[#allocation8 + $0x38] sm:$0xf]
    %v210 = vld [vmem:[#allocation8 + $0x3c] sm:$0xf]
    %v211 = vld [vmem:[#allocation8 + $0x40] sm:$0xf]
    %v212 = vld [vmem:[#allocation8 + $0x44] sm:$0xf]
    %v213 = vld [vmem:[#allocation8 + $0x48] sm:$0xf]
    %v214 = vld [vmem:[#allocation8 + $0x4c] sm:$0xf]
    %v215 = vld [vmem:[#allocation8 + $0x50] sm:$0xf]
    %v216 = vld [vmem:[#allocation8 + $0x54] sm:$0xf]
    %v217 = vld [vmem:[#allocation8 + $0x58] sm:$0xf]
    %v218 = vld [vmem:[#allocation8 + $0x5c] sm:$0xf]
    %v219 = vld [vmem:[#allocation8 + $0x60] sm:$0xf]
    %v220 = vld [vmem:[#allocation8 + $0x64] sm:$0xf]
    %v221 = vld [vmem:[#allocation8 + $0x68] sm:$0xf]
    %v222 = vld [vmem:[#allocation8 + $0x6c] sm:$0xf]
    %v223 = vld [vmem:[#allocation8 + $0x70] sm:$0xf]
    %v224 = vld [vmem:[#allocation8 + $0x74] sm:$0xf]
    %v225 = vld [vmem:[#allocation8 + $0x78] sm:$0xf]
    %v226 = vld [vmem:[#allocation8 + $0x7c] sm:$0xf]
    %v227 = vld [vmem:[#allocation8 + $0x80] sm:$0xf]
    %v228 = vld [vmem:[#allocation8 + $0x84] sm:$0xf]
    %v229 = vld [vmem:[#allocation8 + $0x88] sm:$0xf]
    %v230 = vld [vmem:[#allocation8 + $0x8c] sm:$0xf]
    %v231 = vld [vmem:[#allocation8 + $0x90] sm:$0xf]
    %v232 = vld [vmem:[#allocation8 + $0x94] sm:$0xf]
    %v233 = vld [vmem:[#allocation8 + $0x98] sm:$0xf]
    %v234 = vld [vmem:[#allocation8 + $0x9c] sm:$0xf]
    %v235 = vld [vmem:[#allocation8 + $0xa0] sm:$0xf]
    %v236 = vld [vmem:[#allocation8 + $0xa4] sm:$0xf]
    %v237 = vld [vmem:[#allocation8 + $0xa8] sm:$0xf]
    %v238 = vld [vmem:[#allocation8 + $0xac] sm:$0xf]
    %v239 = vld [vmem:[#allocation8 + $0xb0] sm:$0xf]
    %v240 = vld [vmem:[#allocation8 + $0xb4] sm:$0xf]
    %v241 = vld [vmem:[#allocation8 + $0xb8] sm:$0xf]
    %v242 = vld [vmem:[#allocation8 + $0xbc] sm:$0xf]
    %v275 = vunpack.c.l.b16 %v163
    %v276 = vunpack.c.h.b16 %v163
    %v277 = vunpack.c.l.b16 %v164
    %v278 = vunpack.c.l.b16 %v165
    %v279 = vunpack.c.h.b16 %v165
    %v280 = vunpack.c.l.b16 %v166
    %v281 = vunpack.c.l.b16 %v167
    %v282 = vunpack.c.h.b16 %v167
    %v283 = vunpack.c.l.b16 %v168
    %v284 = vunpack.c.l.b16 %v169
    %v285 = vunpack.c.h.b16 %v169
    %v286 = vunpack.c.l.b16 %v170
    %v287 = vunpack.c.l.b16 %v171
    %v288 = vunpack.c.h.b16 %v171
    %v289 = vunpack.c.l.b16 %v172
    %v290 = vunpack.c.l.b16 %v173
    %v291 = vunpack.c.h.b16 %v173
    %v292 = vunpack.c.l.b16 %v174
    %v293 = vunpack.c.l.b16 %v175
    %v294 = vunpack.c.h.b16 %v175
    %v295 = vunpack.c.l.b16 %v176
    %v296 = vunpack.c.l.b16 %v177
    %v297 = vunpack.c.h.b16 %v177
    %v298 = vunpack.c.l.b16 %v178
    %v299 = vunpack.c.l.b16 %v179
    %v300 = vunpack.c.h.b16 %v179
    %v301 = vunpack.c.l.b16 %v180
    %v302 = vunpack.c.l.b16 %v181
    %v303 = vunpack.c.h.b16 %v181
    %v304 = vunpack.c.l.b16 %v182
    %v305 = vunpack.c.l.b16 %v183
    %v306 = vunpack.c.h.b16 %v183
    %v307 = vunpack.c.l.b16 %v184
    %v308 = vunpack.c.l.b16 %v185
    %v309 = vunpack.c.h.b16 %v185
    %v310 = vunpack.c.l.b16 %v186
    %v311 = vunpack.c.l.b16 %v187
    %v312 = vunpack.c.h.b16 %v187
    %v313 = vunpack.c.l.b16 %v188
    %v314 = vunpack.c.l.b16 %v189
    %v315 = vunpack.c.h.b16 %v189
    %v316 = vunpack.c.l.b16 %v190
    %v317 = vunpack.c.l.b16 %v191
    %v318 = vunpack.c.h.b16 %v191
    %v319 = vunpack.c.l.b16 %v192
    %v320 = vunpack.c.l.b16 %v193
    %v321 = vunpack.c.h.b16 %v193
    %v322 = vunpack.c.l.b16 %v194
    %v323 = vpack.c.b16 %v278, %v275
    %v324 = vpack.c.b16 %v279, %v276
    %v325 = vpack.c.b16 %v280, %v277
    %v326 = vpack.c.b16 %v284, %v281
    %v327 = vpack.c.b16 %v285, %v282
    %v328 = vpack.c.b16 %v286, %v283
    %v329 = vpack.c.b16 %v290, %v287
    %v330 = vpack.c.b16 %v291, %v288
    %v331 = vpack.c.b16 %v292, %v289
    %v332 = vpack.c.b16 %v296, %v293
    %v333 = vpack.c.b16 %v297, %v294
    %v334 = vpack.c.b16 %v298, %v295
    %v335 = vpack.c.b16 %v302, %v299
    %v336 = vpack.c.b16 %v303, %v300
    %v337 = vpack.c.b16 %v304, %v301
    %v338 = vpack.c.b16 %v308, %v305
    %v339 = vpack.c.b16 %v309, %v306
    %v340 = vpack.c.b16 %v310, %v307
    %v341 = vpack.c.b16 %v314, %v311
    %v342 = vpack.c.b16 %v315, %v312
    %v343 = vpack.c.b16 %v316, %v313
    %v344 = vpack.c.b16 %v320, %v317
    %v345 = vpack.c.b16 %v321, %v318
    %v346 = vpack.c.b16 %v322, %v319
    %v419 = vunpack.c.l.b16 %v195
    %v420 = vunpack.c.l.b16 %v196
    %v421 = vunpack.c.l.b16 %v197
    %v422 = vunpack.c.l.b16 %v198
    %v423 = vunpack.c.l.b16 %v199
    %v424 = vunpack.c.l.b16 %v200
    %v425 = vunpack.c.l.b16 %v201
    %v426 = vunpack.c.l.b16 %v202
    %v427 = vunpack.c.l.b16 %v203
    %v428 = vunpack.c.l.b16 %v204
    %v429 = vunpack.c.l.b16 %v205
    %v430 = vunpack.c.l.b16 %v206
    %v431 = vunpack.c.l.b16 %v207
    %v432 = vunpack.c.l.b16 %v208
    %v433 = vunpack.c.l.b16 %v209
    %v434 = vunpack.c.l.b16 %v210
    %v435 = vunpack.c.l.b16 %v211
    %v436 = vunpack.c.l.b16 %v212
    %v437 = vunpack.c.l.b16 %v213
    %v438 = vunpack.c.l.b16 %v214
    %v439 = vunpack.c.l.b16 %v215
    %v440 = vunpack.c.l.b16 %v216
    %v441 = vunpack.c.l.b16 %v217
    %v442 = vunpack.c.l.b16 %v218
    %v443 = vunpack.c.l.b16 %v219
    %v444 = vunpack.c.l.b16 %v220
    %v445 = vunpack.c.l.b16 %v221
    %v446 = vunpack.c.l.b16 %v222
    %v447 = vunpack.c.l.b16 %v223
    %v448 = vunpack.c.l.b16 %v224
    %v449 = vunpack.c.l.b16 %v225
    %v450 = vunpack.c.l.b16 %v226
    %v451 = vunpack.c.l.b16 %v227
    %v452 = vunpack.c.l.b16 %v228
    %v453 = vunpack.c.l.b16 %v229
    %v454 = vunpack.c.l.b16 %v230
    %v455 = vunpack.c.l.b16 %v231
    %v456 = vunpack.c.l.b16 %v232
    %v457 = vunpack.c.l.b16 %v233
    %v458 = vunpack.c.l.b16 %v234
    %v459 = vunpack.c.l.b16 %v235
    %v460 = vunpack.c.l.b16 %v236
    %v461 = vunpack.c.l.b16 %v237
    %v462 = vunpack.c.l.b16 %v238
    %v463 = vunpack.c.l.b16 %v239
    %v464 = vunpack.c.l.b16 %v240
    %v465 = vunpack.c.l.b16 %v241
    %v466 = vunpack.c.l.b16 %v242
    %v467 = vpack.c.b16 %v420, %v419
    %v468 = vpack.c.b16 %v422, %v421
    %v469 = vpack.c.b16 %v424, %v423
    %v470 = vpack.c.b16 %v426, %v425
    %v471 = vpack.c.b16 %v428, %v427
    %v472 = vpack.c.b16 %v430, %v429
    %v473 = vpack.c.b16 %v432, %v431
    %v474 = vpack.c.b16 %v434, %v433
    %v475 = vpack.c.b16 %v436, %v435
    %v476 = vpack.c.b16 %v438, %v437
    %v477 = vpack.c.b16 %v440, %v439
    %v478 = vpack.c.b16 %v442, %v441
    %v479 = vpack.c.b16 %v444, %v443
    %v480 = vpack.c.b16 %v446, %v445
    %v481 = vpack.c.b16 %v448, %v447
    %v482 = vpack.c.b16 %v450, %v449
    %v483 = vpack.c.b16 %v452, %v451
    %v484 = vpack.c.b16 %v454, %v453
    %v485 = vpack.c.b16 %v456, %v455
    %v486 = vpack.c.b16 %v458, %v457
    %v487 = vpack.c.b16 %v460, %v459
    %v488 = vpack.c.b16 %v462, %v461
    %v489 = vpack.c.b16 %v464, %v463
    %v490 = vpack.c.b16 %v466, %v465
    %515 = vmatpush.bf16.msra.mxu0 %v474
    %516 = vmatpush.bf16.msra.mxu0 %v473
    %517 = vmatpush.bf16.msra.mxu0 %v472
    %518 = vmatpush.bf16.msra.mxu0 %v471
    %519 = vmatpush.bf16.msra.mxu0 %v470
    %520 = vmatpush.bf16.msra.mxu0 %v469
    %521 = vmatpush.bf16.msra.mxu0 %v468
    %522 = vmatpush.bf16.msra.mxu0 %v467
    %523 = vmatmul.bf16.gmra.mxu0 %v323
    %v524 = vpop.f32.mrf.mxu0
    %v525 = vadd.f32 0.0, %v524
    %v526 = vpop.f32.mrf.mxu0
    %v527 = vadd.f32 0.0, %v526
    %528 = vmatmul.bf16.gmra.mxu0 %v326
    %v529 = vpop.f32.mrf.mxu0
    %v530 = vadd.f32 0.0, %v529
    %v531 = vpop.f32.mrf.mxu0
    %v532 = vadd.f32 0.0, %v531
    %533 = vmatmul.bf16.gmra.mxu0 %v329
    %v534 = vpop.f32.mrf.mxu0
    %v535 = vadd.f32 0.0, %v534
    %v536 = vpop.f32.mrf.mxu0
    %v537 = vadd.f32 0.0, %v536
    %538 = vmatmul.bf16.gmra.mxu0 %v332
    %v539 = vpop.f32.mrf.mxu0
    %v540 = vadd.f32 0.0, %v539
    %v541 = vpop.f32.mrf.mxu0
    %v542 = vadd.f32 0.0, %v541
    %543 = vmatmul.bf16.gmra.mxu0 %v335
    %v544 = vpop.f32.mrf.mxu0
    %v545 = vadd.f32 0.0, %v544
    %v546 = vpop.f32.mrf.mxu0
    %v547 = vadd.f32 0.0, %v546
    %548 = vmatmul.bf16.gmra.mxu0 %v338
    %v549 = vpop.f32.mrf.mxu0
    %v550 = vadd.f32 0.0, %v549
    %v551 = vpop.f32.mrf.mxu0
    %v552 = vadd.f32 0.0, %v551
    %553 = vmatmul.bf16.gmra.mxu0 %v341
    %v554 = vpop.f32.mrf.mxu0
    %v555 = vadd.f32 0.0, %v554
    %v556 = vpop.f32.mrf.mxu0
    %v557 = vadd.f32 0.0, %v556
    %558 = vmatmul.bf16.gmra.mxu0 %v344
    %v559 = vpop.f32.mrf.mxu0
    %v560 = vadd.f32 0.0, %v559
    %v561 = vpop.f32.mrf.mxu0
    %v562 = vadd.f32 0.0, %v561
    %563 = vdwg.mxu0
    %564 = vmatpush.bf16.msra.mxu0 %v482
    %565 = vmatpush.bf16.msra.mxu0 %v481
    %566 = vmatpush.bf16.msra.mxu0 %v480
    %567 = vmatpush.bf16.msra.mxu0 %v479
    %568 = vmatpush.bf16.msra.mxu0 %v478
    %569 = vmatpush.bf16.msra.mxu0 %v477
    %570 = vmatpush.bf16.msra.mxu0 %v476
    %571 = vmatpush.bf16.msra.mxu0 %v475
    %572 = vmatmul.bf16.gmra.mxu0 %v324
    %v573 = vpop.f32.mrf.mxu0
    %v574 = vadd.f32 %v525, %v573
    %v575 = vpop.f32.mrf.mxu0
    %v576 = vadd.f32 %v527, %v575
    %577 = vmatmul.bf16.gmra.mxu0 %v327
    %v578 = vpop.f32.mrf.mxu0
    %v579 = vadd.f32 %v530, %v578
    %v580 = vpop.f32.mrf.mxu0
    %v581 = vadd.f32 %v532, %v580
    %582 = vmatmul.bf16.gmra.mxu0 %v330
    %v583 = vpop.f32.mrf.mxu0
    %v584 = vadd.f32 %v535, %v583
    %v585 = vpop.f32.mrf.mxu0
    %v586 = vadd.f32 %v537, %v585
    %587 = vmatmul.bf16.gmra.mxu0 %v333
    %v588 = vpop.f32.mrf.mxu0
    %v589 = vadd.f32 %v540, %v588
    %v590 = vpop.f32.mrf.mxu0
    %v591 = vadd.f32 %v542, %v590
    %592 = vmatmul.bf16.gmra.mxu0 %v336
    %v593 = vpop.f32.mrf.mxu0
    %v594 = vadd.f32 %v545, %v593
    %v595 = vpop.f32.mrf.mxu0
    %v596 = vadd.f32 %v547, %v595
    %597 = vmatmul.bf16.gmra.mxu0 %v339
    %v598 = vpop.f32.mrf.mxu0
    %v599 = vadd.f32 %v550, %v598
    %v600 = vpop.f32.mrf.mxu0
    %v601 = vadd.f32 %v552, %v600
    %602 = vmatmul.bf16.gmra.mxu0 %v342
    %v603 = vpop.f32.mrf.mxu0
    %v604 = vadd.f32 %v555, %v603
    %v605 = vpop.f32.mrf.mxu0
    %v606 = vadd.f32 %v557, %v605
    %607 = vmatmul.bf16.gmra.mxu0 %v345
    %v608 = vpop.f32.mrf.mxu0
    %v609 = vadd.f32 %v560, %v608
    %v610 = vpop.f32.mrf.mxu0
    %v611 = vadd.f32 %v562, %v610
    %612 = vdwg.mxu0
    %613 = vmatpush.bf16.msra.mxu0 %v490
    %614 = vmatpush.bf16.msra.mxu0 %v489
    %615 = vmatpush.bf16.msra.mxu0 %v488
    %616 = vmatpush.bf16.msra.mxu0 %v487
    %617 = vmatpush.bf16.msra.mxu0 %v486
    %618 = vmatpush.bf16.msra.mxu0 %v485
    %619 = vmatpush.bf16.msra.mxu0 %v484
    %620 = vmatpush.bf16.msra.mxu0 %v483
    %621 = vmatmul.bf16.gmra.mxu0 %v325
    %v622 = vpop.f32.mrf.mxu0
    %v623 = vadd.f32 %v574, %v622
    %v624 = vpop.f32.mrf.mxu0
    %v625 = vadd.f32 %v576, %v624
    %626 = vmatmul.bf16.gmra.mxu0 %v328
    %v627 = vpop.f32.mrf.mxu0
    %v628 = vadd.f32 %v579, %v627
    %v629 = vpop.f32.mrf.mxu0
    %v630 = vadd.f32 %v581, %v629
    %631 = vmatmul.bf16.gmra.mxu0 %v331
    %v632 = vpop.f32.mrf.mxu0
    %v633 = vadd.f32 %v584, %v632
    %v634 = vpop.f32.mrf.mxu0
    %v635 = vadd.f32 %v586, %v634
    %636 = vmatmul.bf16.gmra.mxu0 %v334
    %v637 = vpop.f32.mrf.mxu0
    %v638 = vadd.f32 %v589, %v637
    %v639 = vpop.f32.mrf.mxu0
    %v640 = vadd.f32 %v591, %v639
    %641 = vmatmul.bf16.gmra.mxu0 %v337
    %v642 = vpop.f32.mrf.mxu0
    %v643 = vadd.f32 %v594, %v642
    %v644 = vpop.f32.mrf.mxu0
    %v645 = vadd.f32 %v596, %v644
    %646 = vmatmul.bf16.gmra.mxu0 %v340
    %v647 = vpop.f32.mrf.mxu0
    %v648 = vadd.f32 %v599, %v647
    %v649 = vpop.f32.mrf.mxu0
    %v650 = vadd.f32 %v601, %v649
    %651 = vmatmul.bf16.gmra.mxu0 %v343
    %v652 = vpop.f32.mrf.mxu0
    %v653 = vadd.f32 %v604, %v652
    %v654 = vpop.f32.mrf.mxu0
    %v655 = vadd.f32 %v606, %v654
    %656 = vmatmul.bf16.gmra.mxu0 %v346
    %v657 = vpop.f32.mrf.mxu0
    %v658 = vadd.f32 %v609, %v657
    %v659 = vpop.f32.mrf.mxu0
    %v660 = vadd.f32 %v611, %v659
    %661 = vdwg.mxu0
    %v662 = vadd.f32 %v147, %v623
    %v663 = vadd.f32 %v148, %v625
    %v664 = vadd.f32 %v149, %v628
    %v665 = vadd.f32 %v150, %v630
    %v666 = vadd.f32 %v151, %v633
    %v667 = vadd.f32 %v152, %v635
    %v668 = vadd.f32 %v153, %v638
    %v669 = vadd.f32 %v154, %v640
    %v670 = vadd.f32 %v155, %v643
    %v671 = vadd.f32 %v156, %v645
    %v672 = vadd.f32 %v157, %v648
    %v673 = vadd.f32 %v158, %v650
    %v674 = vadd.f32 %v159, %v653
    %v675 = vadd.f32 %v160, %v655
    %v676 = vadd.f32 %v161, %v658
    %v677 = vadd.f32 %v162, %v660
    %678 = vst [vmem:[#allocation2] sm:$0xff] %v662
    %679 = vst [vmem:[#allocation2 + $0x8] sm:$0xff] %v663
    %680 = vst [vmem:[#allocation2 + $0x10] sm:$0xff] %v664
    %681 = vst [vmem:[#allocation2 + $0x18] sm:$0xff] %v665
    %682 = vst [vmem:[#allocation2 + $0x20] sm:$0xff] %v666
    %683 = vst [vmem:[#allocation2 + $0x28] sm:$0xff] %v667
    %684 = vst [vmem:[#allocation2 + $0x30] sm:$0xff] %v668
    %685 = vst [vmem:[#allocation2 + $0x38] sm:$0xff] %v669
    %686 = vst [vmem:[#allocation2 + $0x40] sm:$0xff] %v670
    %687 = vst [vmem:[#allocation2 + $0x48] sm:$0xff] %v671
    %688 = vst [vmem:[#allocation2 + $0x50] sm:$0xff] %v672
    %689 = vst [vmem:[#allocation2 + $0x58] sm:$0xff] %v673
    %690 = vst [vmem:[#allocation2 + $0x60] sm:$0xff] %v674
    %691 = vst [vmem:[#allocation2 + $0x68] sm:$0xff] %v675
    %692 = vst [vmem:[#allocation2 + $0x70] sm:$0xff] %v676
    %693 = vst [vmem:[#allocation2 + $0x78] sm:$0xff] %v677
    // Predicated region
    $region66: #{tpu_custom_call.1} parent=1 // pred_check
      %p694 = pneg %p127
    $region67: #{tpu_custom_call.1} parent=1 // pred_check_branch
      %696 = sbr.rel (%p694) target = $region69
    $region68: #{tpu_custom_call.1} parent=1 // pred_region
      %v697 = vld [vmem:[#allocation2] sm:$0xff]
      %v698 = vld [vmem:[#allocation2 + $0x8] sm:$0xff]
      %v699 = vld [vmem:[#allocation2 + $0x10] sm:$0xff]
      %v700 = vld [vmem:[#allocation2 + $0x18] sm:$0xff]
      %v701 = vld [vmem:[#allocation2 + $0x20] sm:$0xff]
      %v702 = vld [vmem:[#allocation2 + $0x28] sm:$0xff]
      %v703 = vld [vmem:[#allocation2 + $0x30] sm:$0xff]
      %v704 = vld [vmem:[#allocation2 + $0x38] sm:$0xff]
      %v705 = vld [vmem:[#allocation2 + $0x40] sm:$0xff]
      %v706 = vld [vmem:[#allocation2 + $0x48] sm:$0xff]
      %v707 = vld [vmem:[#allocation2 + $0x50] sm:$0xff]
      %v708 = vld [vmem:[#allocation2 + $0x58] sm:$0xff]
      %v709 = vld [vmem:[#allocation2 + $0x60] sm:$0xff]
      %v710 = vld [vmem:[#allocation2 + $0x68] sm:$0xff]
      %v711 = vld [vmem:[#allocation2 + $0x70] sm:$0xff]
      %v712 = vld [vmem:[#allocation2 + $0x78] sm:$0xff]
      %v713 = vld [vmem:[%s3] sm:$0x1]
      %v715 = vperm.slane %v713, 0
      %v717 = vadd.f32 %v697, %v715
      %v718 = vadd.f32 %v698, %v715
      %v719 = vadd.f32 %v699, %v715
      %v720 = vadd.f32 %v700, %v715
      %v721 = vadd.f32 %v701, %v715
      %v722 = vadd.f32 %v702, %v715
      %v723 = vadd.f32 %v703, %v715
      %v724 = vadd.f32 %v704, %v715
      %v725 = vadd.f32 %v705, %v715
      %v726 = vadd.f32 %v706, %v715
      %v727 = vadd.f32 %v707, %v715
      %v728 = vadd.f32 %v708, %v715
      %v729 = vadd.f32 %v709, %v715
      %v730 = vadd.f32 %v710, %v715
      %v731 = vadd.f32 %v711, %v715
      %v732 = vadd.f32 %v712, %v715
      %vm733 = vcmp.ge.f32.partialorder %v717, 0.0
      %vm734 = vcmp.ge.f32.partialorder %v718, 0.0
      %vm735 = vcmp.ge.f32.partialorder %v719, 0.0
      %vm736 = vcmp.ge.f32.partialorder %v720, 0.0
      %vm737 = vcmp.ge.f32.partialorder %v721, 0.0
      %vm738 = vcmp.ge.f32.partialorder %v722, 0.0
      %vm739 = vcmp.ge.f32.partialorder %v723, 0.0
      %vm740 = vcmp.ge.f32.partialorder %v724, 0.0
      %vm741 = vcmp.ge.f32.partialorder %v725, 0.0
      %vm742 = vcmp.ge.f32.partialorder %v726, 0.0
      %vm743 = vcmp.ge.f32.partialorder %v727, 0.0
      %vm744 = vcmp.ge.f32.partialorder %v728, 0.0
      %vm745 = vcmp.ge.f32.partialorder %v729, 0.0
      %vm746 = vcmp.ge.f32.partialorder %v730, 0.0
      %vm747 = vcmp.ge.f32.partialorder %v731, 0.0
      %vm748 = vcmp.ge.f32.partialorder %v732, 0.0
      %v749 = vmul.f32 %v717, 0.01
      %v750 = vmul.f32 %v718, 0.01
      %v751 = vmul.f32 %v719, 0.01
      %v752 = vmul.f32 %v720, 0.01
      %v753 = vmul.f32 %v721, 0.01
      %v754 = vmul.f32 %v722, 0.01
      %v755 = vmul.f32 %v723, 0.01
      %v756 = vmul.f32 %v724, 0.01
      %v757 = vmul.f32 %v725, 0.01
      %v758 = vmul.f32 %v726, 0.01
      %v759 = vmul.f32 %v727, 0.01
      %v760 = vmul.f32 %v728, 0.01
      %v761 = vmul.f32 %v729, 0.01
      %v762 = vmul.f32 %v730, 0.01
      %v763 = vmul.f32 %v731, 0.01
      %v764 = vmul.f32 %v732, 0.01
      %v765 = vsel %vm733, %v717, %v749
      %v766 = vsel %vm734, %v718, %v750
      %v767 = vsel %vm735, %v719, %v751
      %v768 = vsel %vm736, %v720, %v752
      %v769 = vsel %vm737, %v721, %v753
      %v770 = vsel %vm738, %v722, %v754
      %v771 = vsel %vm739, %v723, %v755
      %v772 = vsel %vm740, %v724, %v756
      %v773 = vsel %vm741, %v725, %v757
      %v774 = vsel %vm742, %v726, %v758
      %v775 = vsel %vm743, %v727, %v759
      %v776 = vsel %vm744, %v728, %v760
      %v777 = vsel %vm745, %v729, %v761
      %v778 = vsel %vm746, %v730, %v762
      %v779 = vsel %vm747, %v731, %v763
      %v780 = vsel %vm748, %v732, %v764
      %v781 = vpack.c.bf16 %v766, %v765
      %v782 = vpack.c.bf16 %v768, %v767
      %v783 = vpack.c.bf16 %v770, %v769
      %v784 = vpack.c.bf16 %v772, %v771
      %v785 = vpack.c.bf16 %v774, %v773
      %v786 = vpack.c.bf16 %v776, %v775
      %v787 = vpack.c.bf16 %v778, %v777
      %v788 = vpack.c.bf16 %v780, %v779
      %v789 = vld [vmem:[#allocation9] sm:$0xf]
      %v790 = vld [vmem:[#allocation9 + $0x4] sm:$0xf]
      %v791 = vld [vmem:[#allocation9 + $0x8] sm:$0xf]
      %v792 = vld [vmem:[#allocation9 + $0xc] sm:$0xf]
      %v793 = vld [vmem:[#allocation9 + $0x10] sm:$0xf]
      %v794 = vld [vmem:[#allocation9 + $0x14] sm:$0xf]
      %v795 = vld [vmem:[#allocation9 + $0x18] sm:$0xf]
      %v796 = vld [vmem:[#allocation9 + $0x1c] sm:$0xf]
      %v797 = vld [vmem:[#allocation9 + $0x20] sm:$0xf]
      %v798 = vld [vmem:[#allocation9 + $0x24] sm:$0xf]
      %v799 = vld [vmem:[#allocation9 + $0x28] sm:$0xf]
      %v800 = vld [vmem:[#allocation9 + $0x2c] sm:$0xf]
      %v801 = vld [vmem:[#allocation9 + $0x30] sm:$0xf]
      %v802 = vld [vmem:[#allocation9 + $0x34] sm:$0xf]
      %v803 = vld [vmem:[#allocation9 + $0x38] sm:$0xf]
      %v804 = vld [vmem:[#allocation9 + $0x3c] sm:$0xf]
      %v805 = vld [vmem:[#allocation6] sm:$0xf]
      %v806 = vld [vmem:[#allocation6 + $0x4] sm:$0xf]
      %v807 = vld [vmem:[#allocation6 + $0x8] sm:$0xf]
      %v808 = vld [vmem:[#allocation6 + $0xc] sm:$0xf]
      %v809 = vld [vmem:[#allocation6 + $0x10] sm:$0xf]
      %v810 = vld [vmem:[#allocation6 + $0x14] sm:$0xf]
      %v811 = vld [vmem:[#allocation6 + $0x18] sm:$0xf]
      %v812 = vld [vmem:[#allocation6 + $0x1c] sm:$0xf]
      %v813 = vld [vmem:[#allocation6 + $0x20] sm:$0xf]
      %v814 = vld [vmem:[#allocation6 + $0x24] sm:$0xf]
      %v815 = vld [vmem:[#allocation6 + $0x28] sm:$0xf]
      %v816 = vld [vmem:[#allocation6 + $0x2c] sm:$0xf]
      %v817 = vld [vmem:[#allocation6 + $0x30] sm:$0xf]
      %v818 = vld [vmem:[#allocation6 + $0x34] sm:$0xf]
      %v819 = vld [vmem:[#allocation6 + $0x38] sm:$0xf]
      %v820 = vld [vmem:[#allocation6 + $0x3c] sm:$0xf]
      %v821 = vld [vmem:[#allocation11] sm:$0xf]
      %v822 = vld [vmem:[#allocation11 + $0x4] sm:$0xf]
      %v823 = vld [vmem:[#allocation11 + $0x8] sm:$0xf]
      %v824 = vld [vmem:[#allocation11 + $0xc] sm:$0xf]
      %v825 = vld [vmem:[#allocation11 + $0x10] sm:$0xf]
      %v826 = vld [vmem:[#allocation11 + $0x14] sm:$0xf]
      %v827 = vld [vmem:[#allocation11 + $0x18] sm:$0xf]
      %v828 = vld [vmem:[#allocation11 + $0x1c] sm:$0xf]
      %v829 = vld [vmem:[#allocation11 + $0x20] sm:$0xf]
      %v830 = vld [vmem:[#allocation11 + $0x24] sm:$0xf]
      %v831 = vld [vmem:[#allocation11 + $0x28] sm:$0xf]
      %v832 = vld [vmem:[#allocation11 + $0x2c] sm:$0xf]
      %v833 = vld [vmem:[#allocation11 + $0x30] sm:$0xf]
      %v834 = vld [vmem:[#allocation11 + $0x34] sm:$0xf]
      %v835 = vld [vmem:[#allocation11 + $0x38] sm:$0xf]
      %v836 = vld [vmem:[#allocation11 + $0x3c] sm:$0xf]
      %v853 = vunpack.c.l.b16 %v805
      %v854 = vunpack.c.l.b16 %v806
      %v855 = vunpack.c.l.b16 %v807
      %v856 = vunpack.c.l.b16 %v808
      %v857 = vunpack.c.l.b16 %v809
      %v858 = vunpack.c.l.b16 %v810
      %v859 = vunpack.c.l.b16 %v811
      %v860 = vunpack.c.l.b16 %v812
      %v861 = vunpack.c.l.b16 %v813
      %v862 = vunpack.c.l.b16 %v814
      %v863 = vunpack.c.l.b16 %v815
      %v864 = vunpack.c.l.b16 %v816
      %v865 = vunpack.c.l.b16 %v817
      %v866 = vunpack.c.l.b16 %v818
      %v867 = vunpack.c.l.b16 %v819
      %v868 = vunpack.c.l.b16 %v820
      %v869 = vpack.c.b16 %v854, %v853
      %v870 = vpack.c.b16 %v856, %v855
      %v871 = vpack.c.b16 %v858, %v857
      %v872 = vpack.c.b16 %v860, %v859
      %v873 = vpack.c.b16 %v862, %v861
      %v874 = vpack.c.b16 %v864, %v863
      %v875 = vpack.c.b16 %v866, %v865
      %v876 = vpack.c.b16 %v868, %v867
      %v901 = vunpack.c.l.b16 %v821
      %v902 = vunpack.c.l.b16 %v822
      %v903 = vunpack.c.l.b16 %v823
      %v904 = vunpack.c.l.b16 %v824
      %v905 = vunpack.c.l.b16 %v825
      %v906 = vunpack.c.l.b16 %v826
      %v907 = vunpack.c.l.b16 %v827
      %v908 = vunpack.c.l.b16 %v828
      %v909 = vunpack.c.l.b16 %v829
      %v910 = vunpack.c.l.b16 %v830
      %v911 = vunpack.c.l.b16 %v831
      %v912 = vunpack.c.l.b16 %v832
      %v913 = vunpack.c.l.b16 %v833
      %v914 = vunpack.c.l.b16 %v834
      %v915 = vunpack.c.l.b16 %v835
      %v916 = vunpack.c.l.b16 %v836
      %v917 = vpack.c.b16 %v902, %v901
      %v918 = vpack.c.b16 %v904, %v903
      %v919 = vpack.c.b16 %v906, %v905
      %v920 = vpack.c.b16 %v908, %v907
      %v921 = vpack.c.b16 %v910, %v909
      %v922 = vpack.c.b16 %v912, %v911
      %v923 = vpack.c.b16 %v914, %v913
      %v924 = vpack.c.b16 %v916, %v915
      %933 = vmatpush.bf16.msra.mxu0 %v924
      %934 = vmatpush.bf16.msra.mxu0 %v923
      %935 = vmatpush.bf16.msra.mxu0 %v922
      %936 = vmatpush.bf16.msra.mxu0 %v921
      %937 = vmatpush.bf16.msra.mxu0 %v920
      %938 = vmatpush.bf16.msra.mxu0 %v919
      %939 = vmatpush.bf16.msra.mxu0 %v918
      %940 = vmatpush.bf16.msra.mxu0 %v917
      %941 = vmatmul.bf16.gmra.mxu0 %v869
      %v942 = vpop.f32.mrf.mxu0
      %v943 = vadd.f32 0.0, %v942
      %v944 = vpop.f32.mrf.mxu0
      %v945 = vadd.f32 0.0, %v944
      %946 = vmatmul.bf16.gmra.mxu0 %v870
      %v947 = vpop.f32.mrf.mxu0
      %v948 = vadd.f32 0.0, %v947
      %v949 = vpop.f32.mrf.mxu0
      %v950 = vadd.f32 0.0, %v949
      %951 = vmatmul.bf16.gmra.mxu0 %v871
      %v952 = vpop.f32.mrf.mxu0
      %v953 = vadd.f32 0.0, %v952
      %v954 = vpop.f32.mrf.mxu0
      %v955 = vadd.f32 0.0, %v954
      %956 = vmatmul.bf16.gmra.mxu0 %v872
      %v957 = vpop.f32.mrf.mxu0
      %v958 = vadd.f32 0.0, %v957
      %v959 = vpop.f32.mrf.mxu0
      %v960 = vadd.f32 0.0, %v959
      %961 = vmatmul.bf16.gmra.mxu0 %v873
      %v962 = vpop.f32.mrf.mxu0
      %v963 = vadd.f32 0.0, %v962
      %v964 = vpop.f32.mrf.mxu0
      %v965 = vadd.f32 0.0, %v964
      %966 = vmatmul.bf16.gmra.mxu0 %v874
      %v967 = vpop.f32.mrf.mxu0
      %v968 = vadd.f32 0.0, %v967
      %v969 = vpop.f32.mrf.mxu0
      %v970 = vadd.f32 0.0, %v969
      %971 = vmatmul.bf16.gmra.mxu0 %v875
      %v972 = vpop.f32.mrf.mxu0
      %v973 = vadd.f32 0.0, %v972
      %v974 = vpop.f32.mrf.mxu0
      %v975 = vadd.f32 0.0, %v974
      %976 = vmatmul.bf16.gmra.mxu0 %v876
      %v977 = vpop.f32.mrf.mxu0
      %v978 = vadd.f32 0.0, %v977
      %v979 = vpop.f32.mrf.mxu0
      %v980 = vadd.f32 0.0, %v979
      %981 = vdwg.mxu0
      %v998 = vunpack.c.l.b16 %v789
      %v999 = vunpack.c.l.b16 %v790
      %v1000 = vunpack.c.l.b16 %v791
      %v1001 = vunpack.c.l.b16 %v792
      %v1002 = vunpack.c.l.b16 %v793
      %v1003 = vunpack.c.l.b16 %v794
      %v1004 = vunpack.c.l.b16 %v795
      %v1005 = vunpack.c.l.b16 %v796
      %v1006 = vunpack.c.l.b16 %v797
      %v1007 = vunpack.c.l.b16 %v798
      %v1008 = vunpack.c.l.b16 %v799
      %v1009 = vunpack.c.l.b16 %v800
      %v1010 = vunpack.c.l.b16 %v801
      %v1011 = vunpack.c.l.b16 %v802
      %v1012 = vunpack.c.l.b16 %v803
      %v1013 = vunpack.c.l.b16 %v804
      %v1014 = vpack.c.b16 %v999, %v998
      %v1015 = vpack.c.b16 %v1001, %v1000
      %v1016 = vpack.c.b16 %v1003, %v1002
      %v1017 = vpack.c.b16 %v1005, %v1004
      %v1018 = vpack.c.b16 %v1007, %v1006
      %v1019 = vpack.c.b16 %v1009, %v1008
      %v1020 = vpack.c.b16 %v1011, %v1010
      %v1021 = vpack.c.b16 %v1013, %v1012
      %1030 = vmatpush.bf16.msra.mxu0 %v1021
      %1031 = vmatpush.bf16.msra.mxu0 %v1020
      %1032 = vmatpush.bf16.msra.mxu0 %v1019
      %1033 = vmatpush.bf16.msra.mxu0 %v1018
      %1034 = vmatpush.bf16.msra.mxu0 %v1017
      %1035 = vmatpush.bf16.msra.mxu0 %v1016
      %1036 = vmatpush.bf16.msra.mxu0 %v1015
      %1037 = vmatpush.bf16.msra.mxu0 %v1014
      %1038 = vmatmul.bf16.gmra.mxu0 %v781
      %v1039 = vpop.f32.mrf.mxu0
      %v1040 = vadd.f32 %v943, %v1039
      %v1041 = vpop.f32.mrf.mxu0
      %v1042 = vadd.f32 %v945, %v1041
      %1043 = vmatmul.bf16.gmra.mxu0 %v782
      %v1044 = vpop.f32.mrf.mxu0
      %v1045 = vadd.f32 %v948, %v1044
      %v1046 = vpop.f32.mrf.mxu0
      %v1047 = vadd.f32 %v950, %v1046
      %1048 = vmatmul.bf16.gmra.mxu0 %v783
      %v1049 = vpop.f32.mrf.mxu0
      %v1050 = vadd.f32 %v953, %v1049
      %v1051 = vpop.f32.mrf.mxu0
      %v1052 = vadd.f32 %v955, %v1051
      %1053 = vmatmul.bf16.gmra.mxu0 %v784
      %v1054 = vpop.f32.mrf.mxu0
      %v1055 = vadd.f32 %v958, %v1054
      %v1056 = vpop.f32.mrf.mxu0
      %v1057 = vadd.f32 %v960, %v1056
      %1058 = vmatmul.bf16.gmra.mxu0 %v785
      %v1059 = vpop.f32.mrf.mxu0
      %v1060 = vadd.f32 %v963, %v1059
      %v1061 = vpop.f32.mrf.mxu0
      %v1062 = vadd.f32 %v965, %v1061
      %1063 = vmatmul.bf16.gmra.mxu0 %v786
      %v1064 = vpop.f32.mrf.mxu0
      %v1065 = vadd.f32 %v968, %v1064
      %v1066 = vpop.f32.mrf.mxu0
      %v1067 = vadd.f32 %v970, %v1066
      %1068 = vmatmul.bf16.gmra.mxu0 %v787
      %v1069 = vpop.f32.mrf.mxu0
      %v1070 = vadd.f32 %v973, %v1069
      %v1071 = vpop.f32.mrf.mxu0
      %v1072 = vadd.f32 %v975, %v1071
      %1073 = vmatmul.bf16.gmra.mxu0 %v788
      %v1074 = vpop.f32.mrf.mxu0
      %v1075 = vadd.f32 %v978, %v1074
      %v1076 = vpop.f32.mrf.mxu0
      %v1077 = vadd.f32 %v980, %v1076
      %1078 = vdwg.mxu0
      %v1079 = vld [vmem:[%s6] sm:$0x1]
      %v1081 = vperm.slane %v1079, 0
      %v1083 = vadd.f32 %v1040, %v1081
      %v1084 = vadd.f32 %v1042, %v1081
      %v1085 = vadd.f32 %v1045, %v1081
      %v1086 = vadd.f32 %v1047, %v1081
      %v1087 = vadd.f32 %v1050, %v1081
      %v1088 = vadd.f32 %v1052, %v1081
      %v1089 = vadd.f32 %v1055, %v1081
      %v1090 = vadd.f32 %v1057, %v1081
      %v1091 = vadd.f32 %v1060, %v1081
      %v1092 = vadd.f32 %v1062, %v1081
      %v1093 = vadd.f32 %v1065, %v1081
      %v1094 = vadd.f32 %v1067, %v1081
      %v1095 = vadd.f32 %v1070, %v1081
      %v1096 = vadd.f32 %v1072, %v1081
      %v1097 = vadd.f32 %v1075, %v1081
      %v1098 = vadd.f32 %v1077, %v1081
      %vm1099 = vcmp.ge.f32.partialorder %v1083, 0.0
      %vm1100 = vcmp.ge.f32.partialorder %v1084, 0.0
      %vm1101 = vcmp.ge.f32.partialorder %v1085, 0.0
      %vm1102 = vcmp.ge.f32.partialorder %v1086, 0.0
      %vm1103 = vcmp.ge.f32.partialorder %v1087, 0.0
      %vm1104 = vcmp.ge.f32.partialorder %v1088, 0.0
      %vm1105 = vcmp.ge.f32.partialorder %v1089, 0.0
      %vm1106 = vcmp.ge.f32.partialorder %v1090, 0.0
      %vm1107 = vcmp.ge.f32.partialorder %v1091, 0.0
      %vm1108 = vcmp.ge.f32.partialorder %v1092, 0.0
      %vm1109 = vcmp.ge.f32.partialorder %v1093, 0.0
      %vm1110 = vcmp.ge.f32.partialorder %v1094, 0.0
      %vm1111 = vcmp.ge.f32.partialorder %v1095, 0.0
      %vm1112 = vcmp.ge.f32.partialorder %v1096, 0.0
      %vm1113 = vcmp.ge.f32.partialorder %v1097, 0.0
      %vm1114 = vcmp.ge.f32.partialorder %v1098, 0.0
      %v1115 = vmul.f32 %v1083, 0.01
      %v1116 = vmul.f32 %v1084, 0.01
      %v1117 = vmul.f32 %v1085, 0.01
      %v1118 = vmul.f32 %v1086, 0.01
      %v1119 = vmul.f32 %v1087, 0.01
      %v1120 = vmul.f32 %v1088, 0.01
      %v1121 = vmul.f32 %v1089, 0.01
      %v1122 = vmul.f32 %v1090, 0.01
      %v1123 = vmul.f32 %v1091, 0.01
      %v1124 = vmul.f32 %v1092, 0.01
      %v1125 = vmul.f32 %v1093, 0.01
      %v1126 = vmul.f32 %v1094, 0.01
      %v1127 = vmul.f32 %v1095, 0.01
      %v1128 = vmul.f32 %v1096, 0.01
      %v1129 = vmul.f32 %v1097, 0.01
      %v1130 = vmul.f32 %v1098, 0.01
      %v1131 = vsel %vm1099, %v1083, %v1115
      %v1132 = vsel %vm1100, %v1084, %v1116
      %v1133 = vsel %vm1101, %v1085, %v1117
      %v1134 = vsel %vm1102, %v1086, %v1118
      %v1135 = vsel %vm1103, %v1087, %v1119
      %v1136 = vsel %vm1104, %v1088, %v1120
      %v1137 = vsel %vm1105, %v1089, %v1121
      %v1138 = vsel %vm1106, %v1090, %v1122
      %v1139 = vsel %vm1107, %v1091, %v1123
      %v1140 = vsel %vm1108, %v1092, %v1124
      %v1141 = vsel %vm1109, %v1093, %v1125
      %v1142 = vsel %vm1110, %v1094, %v1126
      %v1143 = vsel %vm1111, %v1095, %v1127
      %v1144 = vsel %vm1112, %v1096, %v1128
      %v1145 = vsel %vm1113, %v1097, %v1129
      %v1146 = vsel %vm1114, %v1098, %v1130
      %v1147 = vpack.c.bf16 %v1132, %v1131
      %v1148 = vpack.c.bf16 %v1134, %v1133
      %v1149 = vpack.c.bf16 %v1136, %v1135
      %v1150 = vpack.c.bf16 %v1138, %v1137
      %v1151 = vpack.c.bf16 %v1140, %v1139
      %v1152 = vpack.c.bf16 %v1142, %v1141
      %v1153 = vpack.c.bf16 %v1144, %v1143
      %v1154 = vpack.c.bf16 %v1146, %v1145
      %v1155 = vld [vmem:[#allocation12] sm:$0xf]
      %v1156 = vld [vmem:[#allocation12 + $0x4] sm:$0xf]
      %v1157 = vld [vmem:[#allocation12 + $0x8] sm:$0xf]
      %v1158 = vld [vmem:[#allocation12 + $0xc] sm:$0xf]
      %v1159 = vld [vmem:[#allocation12 + $0x10] sm:$0xf]
      %v1160 = vld [vmem:[#allocation12 + $0x14] sm:$0xf]
      %v1161 = vld [vmem:[#allocation12 + $0x18] sm:$0xf]
      %v1162 = vld [vmem:[#allocation12 + $0x1c] sm:$0xf]
      %v1163 = vld [vmem:[#allocation12 + $0x20] sm:$0xf]
      %v1164 = vld [vmem:[#allocation12 + $0x24] sm:$0xf]
      %v1165 = vld [vmem:[#allocation12 + $0x28] sm:$0xf]
      %v1166 = vld [vmem:[#allocation12 + $0x2c] sm:$0xf]
      %v1167 = vld [vmem:[#allocation12 + $0x30] sm:$0xf]
      %v1168 = vld [vmem:[#allocation12 + $0x34] sm:$0xf]
      %v1169 = vld [vmem:[#allocation12 + $0x38] sm:$0xf]
      %v1170 = vld [vmem:[#allocation12 + $0x3c] sm:$0xf]
      %v1171 = vld [vmem:[%s8] sm:$0x1]
      %v1173 = vperm.slane %v1171, 0
      %v1191 = vunpack.c.l.b16 %v1155
      %v1192 = vunpack.c.l.b16 %v1156
      %v1193 = vunpack.c.l.b16 %v1157
      %v1194 = vunpack.c.l.b16 %v1158
      %v1195 = vunpack.c.l.b16 %v1159
      %v1196 = vunpack.c.l.b16 %v1160
      %v1197 = vunpack.c.l.b16 %v1161
      %v1198 = vunpack.c.l.b16 %v1162
      %v1199 = vunpack.c.l.b16 %v1163
      %v1200 = vunpack.c.l.b16 %v1164
      %v1201 = vunpack.c.l.b16 %v1165
      %v1202 = vunpack.c.l.b16 %v1166
      %v1203 = vunpack.c.l.b16 %v1167
      %v1204 = vunpack.c.l.b16 %v1168
      %v1205 = vunpack.c.l.b16 %v1169
      %v1206 = vunpack.c.l.b16 %v1170
      %v1207 = vpack.c.b16 %v1192, %v1191
      %v1208 = vpack.c.b16 %v1194, %v1193
      %v1209 = vpack.c.b16 %v1196, %v1195
      %v1210 = vpack.c.b16 %v1198, %v1197
      %v1211 = vpack.c.b16 %v1200, %v1199
      %v1212 = vpack.c.b16 %v1202, %v1201
      %v1213 = vpack.c.b16 %v1204, %v1203
      %v1214 = vpack.c.b16 %v1206, %v1205
      %1223 = vmatpush.bf16.msra.mxu0 %v1214
      %1224 = vmatpush.bf16.msra.mxu0 %v1213
      %1225 = vmatpush.bf16.msra.mxu0 %v1212
      %1226 = vmatpush.bf16.msra.mxu0 %v1211
      %1227 = vmatpush.bf16.msra.mxu0 %v1210
      %1228 = vmatpush.bf16.msra.mxu0 %v1209
      %1229 = vmatpush.bf16.msra.mxu0 %v1208
      %1230 = vmatpush.bf16.msra.mxu0 %v1207
      %1231 = vmatmul.bf16.gmra.mxu0 %v1147
      %v1232 = vpop.f32.mrf.mxu0
      %v1233 = vadd.f32 %v1173, %v1232
      %v1234 = vpop.f32.mrf.mxu0
      %v1235 = vadd.f32 %v1173, %v1234
      %1236 = vmatmul.bf16.gmra.mxu0 %v1148
      %v1237 = vpop.f32.mrf.mxu0
      %v1238 = vadd.f32 %v1173, %v1237
      %v1239 = vpop.f32.mrf.mxu0
      %v1240 = vadd.f32 %v1173, %v1239
      %1241 = vmatmul.bf16.gmra.mxu0 %v1149
      %v1242 = vpop.f32.mrf.mxu0
      %v1243 = vadd.f32 %v1173, %v1242
      %v1244 = vpop.f32.mrf.mxu0
      %v1245 = vadd.f32 %v1173, %v1244
      %1246 = vmatmul.bf16.gmra.mxu0 %v1150
      %v1247 = vpop.f32.mrf.mxu0
      %v1248 = vadd.f32 %v1173, %v1247
      %v1249 = vpop.f32.mrf.mxu0
      %v1250 = vadd.f32 %v1173, %v1249
      %1251 = vmatmul.bf16.gmra.mxu0 %v1151
      %v1252 = vpop.f32.mrf.mxu0
      %v1253 = vadd.f32 %v1173, %v1252
      %v1254 = vpop.f32.mrf.mxu0
      %v1255 = vadd.f32 %v1173, %v1254
      %1256 = vmatmul.bf16.gmra.mxu0 %v1152
      %v1257 = vpop.f32.mrf.mxu0
      %v1258 = vadd.f32 %v1173, %v1257
      %v1259 = vpop.f32.mrf.mxu0
      %v1260 = vadd.f32 %v1173, %v1259
      %1261 = vmatmul.bf16.gmra.mxu0 %v1153
      %v1262 = vpop.f32.mrf.mxu0
      %v1263 = vadd.f32 %v1173, %v1262
      %v1264 = vpop.f32.mrf.mxu0
      %v1265 = vadd.f32 %v1173, %v1264
      %1266 = vmatmul.bf16.gmra.mxu0 %v1154
      %v1267 = vpop.f32.mrf.mxu0
      %v1268 = vadd.f32 %v1173, %v1267
      %v1269 = vpop.f32.mrf.mxu0
      %v1270 = vadd.f32 %v1173, %v1269
      %1271 = vdwg.mxu0
      %1272 = vst [vmem:[#allocation14] sm:$0xff] %v1233
      %1273 = vst [vmem:[#allocation14 + $0x8] sm:$0xff] %v1235
      %1274 = vst [vmem:[#allocation14 + $0x10] sm:$0xff] %v1238
      %1275 = vst [vmem:[#allocation14 + $0x18] sm:$0xff] %v1240
      %1276 = vst [vmem:[#allocation14 + $0x20] sm:$0xff] %v1243
      %1277 = vst [vmem:[#allocation14 + $0x28] sm:$0xff] %v1245
      %1278 = vst [vmem:[#allocation14 + $0x30] sm:$0xff] %v1248
      %1279 = vst [vmem:[#allocation14 + $0x38] sm:$0xff] %v1250
      %1280 = vst [vmem:[#allocation14 + $0x40] sm:$0xff] %v1253
      %1281 = vst [vmem:[#allocation14 + $0x48] sm:$0xff] %v1255
      %1282 = vst [vmem:[#allocation14 + $0x50] sm:$0xff] %v1258
      %1283 = vst [vmem:[#allocation14 + $0x58] sm:$0xff] %v1260
      %1284 = vst [vmem:[#allocation14 + $0x60] sm:$0xff] %v1263
      %1285 = vst [vmem:[#allocation14 + $0x68] sm:$0xff] %v1265
      %1286 = vst [vmem:[#allocation14 + $0x70] sm:$0xff] %v1268
      %1287 = vst [vmem:[#allocation14 + $0x78] sm:$0xff] %v1270
    $region69: #{tpu_custom_call.1} parent=1 // pred_fallthru
      _
    // Predicated region
    $region70: #{tpu_custom_call.1} parent=1 // pred_check
      _
    $region71: #{tpu_custom_call.1} parent=1 // pred_check_branch
      %1289 = sbr.rel (0) target = $region73
    $region72: #{tpu_custom_call.1} parent=1 // pred_region
      %1291 = vsyncadd [#allocation5], 0
      %s1292 = sshll.u32 [#allocation14], 4
      %s1293 = int_to_ptr.vmem [resolvable:$true] %s1292
      %s1294 = sshll.u32 %s9, 4
      %s1295 = int_to_ptr.hbm [resolvable:$true] %s1294
      %1300 = dma.vmem_to_hbm [thread:$0]  %s1293, 2048, %s1295, [#allocation5], 128, 128, 8
    $region73: #{tpu_custom_call.1} parent=1 // pred_fallthru
      _
    // Predicated region
    $region74: #{tpu_custom_call.1} parent=1 // pred_check
      _
    $region75: #{tpu_custom_call.1} parent=1 // pred_check_branch
      %1302 = sbr.rel (0) target = $region77
    $region76: #{tpu_custom_call.1} parent=1 // pred_region
      %1304 = dma.done [#allocation5], 2048
    $region77: #{tpu_custom_call.1} parent=1 // pred_fallthru
      _
    %1305 = vsyncpa [#allocation4], 1
    %1306 = vsyncpa [#allocation7], 1
    %1307 = vsyncpa [#allocation10], 1
    %1308 = vsyncpa [#allocation13], 1
    %1309 = vsyncpa [#allocation5], 1

</llo_original>
